<compile_context>
chip_gen: v7x
topology: tpu7x:2x2x1
jax: 0.10.0
libtpu: 0.0.40
codegen_flags: <defaults>
</compile_context>

<pallas_src>
import numpy as np
import jax
import jax.numpy as jnp
from jax.experimental import pallas as pl
from jax.experimental.pallas import tpu as pltpu


def _interp_matrix_np(n_in: int, n_out: int) -> np.ndarray:
    """Row-interpolation matrix M (n_out, n_in): out = M @ in, align_corners=True."""
    scale = (n_in - 1) / (n_out - 1) if n_out > 1 else 0.0
    src = np.arange(n_out, dtype=np.float64) * scale
    i0 = np.clip(np.floor(src), 0, n_in - 1).astype(np.int64)
    i1 = np.clip(i0 + 1, 0, n_in - 1)
    frac = src - i0
    m = np.zeros((n_out, n_in), dtype=np.float64)
    np.add.at(m, (np.arange(n_out), i0), 1.0 - frac)
    np.add.at(m, (np.arange(n_out), i1), frac)
    return m


def _pick_tile(n: int, tn_req: int) -> int:
    """Pick a batch tile: multiple of 8, <= n (rounded), >=2 grid steps when possible."""
    tn = max(8, min(tn_req, n))
    tn = max(8, (tn // 8) * 8)
    # Keep at least 2 grid steps so v7x megacore sharding + DMA/compute overlap work.
    if n > 8 and pl.cdiv(n, tn) < 2:
        tn = max(8, ((pl.cdiv(n, 2) + 7) // 8) * 8)
    return tn


def _interp_kernel(mt_ref, x_ref, o_ref):
    # mt_ref: (K, P) resident interpolation weights (kron(Wh, Ww)^T)
    # x_ref : (tn, K) flattened input rows
    # o_ref : (tn, P) flattened output rows (P = Ho*Wo, lane-dense, unmasked stores)
    o_ref[...] = jnp.dot(
        x_ref[...].astype(jnp.float32),
        mt_ref[...],
        preferred_element_type=jnp.float32,
    ).astype(o_ref.dtype)


def interpolate_2x_bilinear(x, *, tn=512):
    """x: (B, C, D, H, W) -> (B, C, D, 2H, 2W), bilinear, align_corners=True."""
    # TODO(synk): scale_factor branch of the module not exposed; the same kron
    # construction works for any target size, this wrapper fixes size=(2H, 2W).
    B, C, D, H, W = x.shape
    Ho, Wo = 2 * H, 2 * W
    N = B * C * D
    K = H * W
    P = Ho * Wo

    # Compile-time constant weights: out_flat = x_flat @ kron(Wh, Ww)^T
    wh = _interp_matrix_np(H, Ho)                                 # (Ho, H)
    ww = _interp_matrix_np(W, Wo)                                 # (Wo, W)
    mt = jnp.asarray(np.kron(wh, ww).T, dtype=jnp.float32)        # (K, P)

    tn_eff = _pick_tile(N, tn)
    n_blocks = pl.cdiv(N, tn_eff)
    Np = n_blocks * tn_eff

    x_flat = x.reshape(N, K)
    if Np != N:
        x_flat = jnp.pad(x_flat, ((0, Np - N), (0, 0)))

    itemsize = jnp.dtype(x.dtype).itemsize
    cost = pl.CostEstimate(
        flops=2 * Np * K * P,
        transcendentals=0,
        bytes_accessed=(Np * K + Np * P) * itemsize + K * P * 4,
    )

    out_flat = pl.pallas_call(
        _interp_kernel,
        out_shape=jax.ShapeDtypeStruct((Np, P), x.dtype),
        grid_spec=pltpu.PrefetchScalarGridSpec(
            num_scalar_prefetch=0,
            grid=(n_blocks,),
            in_specs=[
                pl.BlockSpec((K, P), lambda i: (0, 0)),        # weights: resident, DMA'd once
                pl.BlockSpec((tn_eff, K), lambda i: (i, 0)),   # input rows
            ],
            out_specs=pl.BlockSpec((tn_eff, P), lambda i: (i, 0)),
        ),
        compiler_params=pltpu.CompilerParams(
            dimension_semantics=("parallel",),
            vmem_limit_bytes=32 * 1024 * 1024,
        ),
        cost_estimate=cost,
    )(mt, x_flat)

    if Np != N:
        out_flat = out_flat[:N]
    return out_flat.reshape(B, C, D, Ho, Wo)


def _reference_bilinear(x):
    """Pure-JAX pointwise reference (align_corners=True), for correctness check."""
    B, C, D, H, W = x.shape
    Ho, Wo = 2 * H, 2 * W
    xf = x.reshape(B * C * D, H, W).astype(jnp.float32)

    def axis_idx(n_in, n_out):
        scale = (n_in - 1) / (n_out - 1) if n_out > 1 else 0.0
        src = jnp.arange(n_out, dtype=jnp.float32) * scale
        i0 = jnp.clip(jnp.floor(src), 0, n_in - 1).astype(jnp.int32)
        i1 = jnp.clip(i0 + 1, 0, n_in - 1)
        f = src - i0.astype(jnp.float32)
        return i0, i1, f

    r0, r1, rf = axis_idx(H, Ho)
    c0, c1, cf = axis_idx(W, Wo)
    top = xf[:, r0][:, :, c0] * (1 - cf)[None, None, :] + xf[:, r0][:, :, c1] * cf[None, None, :]
    bot = xf[:, r1][:, :, c0] * (1 - cf)[None, None, :] + xf[:, r1][:, :, c1] * cf[None, None, :]
    out = top * (1 - rf)[None, :, None] + bot * rf[None, :, None]
    return out.reshape(B, C, D, Ho, Wo).astype(x.dtype)


if __name__ == "__main__":
    key = jax.random.PRNGKey(0)
    B, C, D, H, W = 2, 4, 8, 16, 16
    x = jax.random.normal(key, (B, C, D, H, W), dtype=jnp.float32)

    out = jax.block_until_ready(interpolate_2x_bilinear(x))
    assert out.shape == (B, C, D, 2 * H, 2 * W), out.shape

    ref = _reference_bilinear(x)
    err = float(jnp.max(jnp.abs(out - ref)))
    assert err < 1e-4, f"max abs error {err}"

    print("KERNEL_OK")
</pallas_src>

<mosaic_0001>
module attributes {stable_mosaic.version = 11 : i64} {
  func.func @_interp_kernel(%arg0: i32, %arg1: memref<256x1024xf32, #tpu.memory_space<vmem>>, %arg2: memref<32x256xf32, #tpu.memory_space<vmem>>, %arg3: memref<32x1024xf32, #tpu.memory_space<vmem>>) attributes {dimension_semantics = [#tpu.dimension_semantics<parallel>], iteration_bounds = array<i64: 2>, scalar_prefetch = 0 : i64, scratch_operands = 0 : i64, tpu.core_type = #tpu.core_type<tc>, window_params = [{pipeline_mode = #tpu.pipeline_mode<synchronous>, transform_indices = @transform_0, window_bounds = array<i64: 256, 1024>}, {transform_indices = @transform_1, window_bounds = array<i64: 32, 256>}, {transform_indices = @transform_2, window_bounds = array<i64: 32, 1024>}]} {
    %c0 = arith.constant 0 : index
    %c0_0 = arith.constant 0 : index
    %0 = vector.load %arg2[%c0, %c0_0] : memref<32x256xf32, #tpu.memory_space<vmem>>, vector<32x256xf32>
    %c0_1 = arith.constant 0 : index
    %c0_2 = arith.constant 0 : index
    %1 = vector.load %arg1[%c0_1, %c0_2] : memref<256x1024xf32, #tpu.memory_space<vmem>>, vector<256x1024xf32>
    %cst = arith.constant dense<0.000000e+00> : vector<32x1024xf32>
    %2 = tpu.matmul %0, %1, %cst {dimension_numbers = #tpu.dot_dimension_numbers<[1], [0], [0], [1], [0, 0, 1, 1], [], []>} : vector<32x256xf32>, vector<256x1024xf32>, vector<32x1024xf32> -> vector<32x1024xf32>
    %c0_3 = arith.constant 0 : index
    %c0_4 = arith.constant 0 : index
    %3 = vector.load %arg3[%c0_3, %c0_4] : memref<32x1024xf32, #tpu.memory_space<vmem>>, vector<32x1024xf32>
    tpu.vector_store %arg3[%c0_3, %c0_4], %2 {strides = array<i32>} : memref<32x1024xf32, #tpu.memory_space<vmem>>, vector<32x1024xf32>,
    return
  }
  func.func @transform_0(%arg0: i32) -> (i32, i32) {
    %c0_i32 = arith.constant 0 : i32
    %c0_i32_0 = arith.constant 0 : i32
    %c0_i32_1 = arith.constant 0 : i32
    return %c0_i32, %c0_i32_0 : i32, i32
  }
  func.func @transform_1(%arg0: i32) -> (i32, i32) {
    %c0_i32 = arith.constant 0 : i32
    %c0_i32_0 = arith.constant 0 : i32
    return %arg0, %c0_i32 : i32, i32
  }
  func.func @transform_2(%arg0: i32) -> (i32, i32) {
    %c0_i32 = arith.constant 0 : i32
    %c0_i32_0 = arith.constant 0 : i32
    return %arg0, %c0_i32 : i32, i32
  }
}

</mosaic_0001>

<llo_original>
// kernel: tpu_custom_call.1
$region0: #{tpu_custom_call.1}
  #allocation0 [shape = 'u32[]', space=smem, size = 0x4, offset = 0x4, fixed_abs, tag = 'smem constant byte address 0x4 - core index']
  #allocation1 [shape = 'u32[144,128]{1,0:T(1,128)}', space=vmem, size = 0x12000, scoped, tag = 'internal scratch']
  %s0 = inlined_call_operand.hbm [shape: f32[256,1024], index: 0, kind: input, shape index: {}]
  %s1 = inlined_call_operand.hbm [shape: f32[64,256], index: 1, kind: input, shape index: {}]
  %s2 = inlined_call_operand.hbm [shape: f32[64,1024], index: 2, kind: output, shape index: {}]
  %s3 = sld [smem:[#allocation0]]
  $region49: #{tpu_custom_call.1} parent=0
    _
  %s5 = ssub.s32 1, %s3
  %s6 = scalar_select 0, %s5, %s3
  $region1: #{tpu_custom_call.1} parent=0
    #allocation2 [shape = 'u8[1048576]{0}', space=vmem, size = 0x100000, scoped, tag = 'input window, operand 0, single buffered']
    #allocation3 [shape = 's32[2]{0}', space=sflag, size = 0x8, scoped, tag = 'scoped memory for tpu_custom_call.1']
    #allocation4 [shape = 's32[2]{0}', space=sflag, size = 0x8, scoped, tag = 'scoped memory for tpu_custom_call.1']
    #allocation5 [shape = 'u8[65536]{0}', space=vmem, size = 0x10000, scoped, tag = 'input window, operand 1']
    #allocation6 [shape = 's32[2]{0}', space=sflag, size = 0x8, scoped, tag = 'scoped memory for tpu_custom_call.1']
    #allocation7 [shape = 'u8[262144]{0}', space=vmem, size = 0x40000, scoped, tag = 'output window, operand 0']
    %7 = vsyncpa [#allocation3], 0
    %8 = vsyncpa [#allocation6], 0
    %s9 = scalar_lea.sflag [#allocation6], 1
    %10 = vsyncpa %s9, 0
    %11 = vsyncpa [#allocation4], 0
    %s12 = scalar_lea.sflag [#allocation4], 1
    %13 = vsyncpa %s12, 0
    loop: start=0, step=1, limit=4
    $region2: #{tpu_custom_call.1} parent=1 // loop_pre_header
      _
    $region3: #{tpu_custom_call.1} parent=1 // loop_header
      %s15 = sphi 0, %s19
      %p16 = scmp.ge.s32.totalorder %s15, 4
      %s23 = sphi 0, %s23
      %s25 = sphi 0, %s23
      %s26 = sphi 0, %s25
      %s40 = sphi 0, %s26
      %s46 = sphi 0, %s48
      %s49 = sphi 0, %s46
      %s50 = sphi 0, %s49
      %s66 = sphi 0, %s50
      %s72 = sphi 0, %s74
      %s75 = sphi 0, %s72
      %s76 = sphi 0, %s75
      %s92 = sphi 0, %s76
    $region4: #{tpu_custom_call.1} parent=1 // loop_header_branch
      %18 = sbr.rel (%p16) target = $region8
    $region5: #{tpu_custom_call.1} parent=1 // loop_body
      %s20 = ssub.s32 %s15, 1
      %s21 = ssub.s32 %s15, 2
      %s22 = sadd.s32 %s15, 1
      %s24 = sadd.s32 %s23, 1
      %p27 = scmp.eq.s32.totalorder %s15, 1
      %p28 = scmp.ne.s32.totalorder %s23, %s25
      %p29 = scmp.eq.s32.totalorder %s15, 0
      %p30 = por %p28, %p29
      %p31 = scmp.ne.s32.totalorder %s23, %s25
      %p32 = scmp.eq.s32.totalorder %s20, 1
      %p33 = por %p31, %p32
      %p34 = scmp.ne.s32.totalorder %s25, %s26
      %p35 = scmp.eq.s32.totalorder %s20, 0
      %p36 = por %p34, %p35
      %p37 = scmp.ne.s32.totalorder %s25, %s26
      %p38 = scmp.eq.s32.totalorder %s21, 1
      %p39 = por %p37, %p38
      %p41 = scmp.ne.s32.totalorder %s26, %s40
      %p42 = scmp.eq.s32.totalorder %s21, 0
      %p43 = por %p41, %p42
      %s44 = ssub.s32 %s15, %s22
      %p45 = scmp.eq.s32.totalorder %s44, 0
      %s47 = sadd.s32 %s46, 1
      %s48 = scalar_select %p45, %s46, %s47
      %p51 = pneg %p45
      %p52 = scmp.eq.s32.totalorder %s15, 1
      %p53 = por %p51, %p52
      %p54 = scmp.ne.s32.totalorder %s46, %s49
      %p55 = scmp.eq.s32.totalorder %s15, 0
      %p56 = por %p54, %p55
      %p57 = scmp.ne.s32.totalorder %s46, %s49
      %p58 = scmp.eq.s32.totalorder %s20, 1
      %p59 = por %p57, %p58
      %p60 = scmp.ne.s32.totalorder %s49, %s50
      %p61 = scmp.eq.s32.totalorder %s20, 0
      %p62 = por %p60, %p61
      %p63 = scmp.ne.s32.totalorder %s49, %s50
      %p64 = scmp.eq.s32.totalorder %s21, 1
      %p65 = por %p63, %p64
      %p67 = scmp.ne.s32.totalorder %s50, %s66
      %p68 = scmp.eq.s32.totalorder %s21, 0
      %p69 = por %p67, %p68
      %s70 = ssub.s32 %s15, %s22
      %p71 = scmp.eq.s32.totalorder %s70, 0
      %s73 = sadd.s32 %s72, 1
      %s74 = scalar_select %p71, %s72, %s73
      %p77 = pneg %p71
      %p78 = scmp.eq.s32.totalorder %s15, 1
      %p79 = por %p77, %p78
      %p80 = scmp.ne.s32.totalorder %s72, %s75
      %p81 = scmp.eq.s32.totalorder %s15, 0
      %p82 = por %p80, %p81
      %p83 = scmp.ne.s32.totalorder %s72, %s75
      %p84 = scmp.eq.s32.totalorder %s20, 1
      %p85 = por %p83, %p84
      %p86 = scmp.ne.s32.totalorder %s75, %s76
      %p87 = scmp.eq.s32.totalorder %s20, 0
      %p88 = por %p86, %p87
      %p89 = scmp.ne.s32.totalorder %s75, %s76
      %p90 = scmp.eq.s32.totalorder %s21, 1
      %p91 = por %p89, %p90
      %p93 = scmp.ne.s32.totalorder %s76, %s92
      %p94 = scmp.eq.s32.totalorder %s21, 0
      %p95 = por %p93, %p94
      %p96 = scmp.le.s32.totalorder 1, %s15
      %p97 = scmp.lt.s32.totalorder %s15, 3
      %p98 = pnand %p96, %p97
      %p99 = pneg %p98
      // Predicated region
      $region9: #{tpu_custom_call.1} parent=5 // pred_check
        _
      $region10: #{tpu_custom_call.1} parent=5 // pred_check_branch
        %101 = sbr.rel (%p98) target = $region12
      $region11: #{tpu_custom_call.1} parent=5 // pred_region
        %s102 = ssub.s32 %s15, 1
        // Predicated region
        $region13: #{tpu_custom_call.1} parent=11 // pred_check
          %p103 = pneg %p36
        $region14: #{tpu_custom_call.1} parent=11 // pred_check_branch
          %105 = sbr.rel (%p103) target = $region16
        $region15: #{tpu_custom_call.1} parent=11 // pred_region
          %s107 = ssub.s32 32768, 32768
          %108 = vsyncadd [#allocation3], %s107
          %s109 = sshll.u32 [#allocation2], 4
          %s110 = int_to_ptr.vmem [resolvable:$true] %s109
          %115 = dma.hbm_to_vmem [thread:$0]  %s0, 32768, %s110, [#allocation3], 1024, 1024, 64
        $region16: #{tpu_custom_call.1} parent=11 // pred_fallthru
          _
      $region12: #{tpu_custom_call.1} parent=5 // pred_fallthru
        _
      %p116 = scmp.lt.s32.totalorder %s15, 2
      // Predicated region
      $region17: #{tpu_custom_call.1} parent=5 // pred_check
        %p117 = pneg %p116
      $region18: #{tpu_custom_call.1} parent=5 // pred_check_branch
        %119 = sbr.rel (%p117) target = $region20
      $region19: #{tpu_custom_call.1} parent=5 // pred_region
        // Predicated region
        $region21: #{tpu_custom_call.1} parent=19 // pred_check
          %p120 = pneg %p56
        $region22: #{tpu_custom_call.1} parent=19 // pred_check_branch
          %122 = sbr.rel (%p120) target = $region24
        $region23: #{tpu_custom_call.1} parent=19 // pred_region
          %s123 = sand.u32 %s46, 1
          %s124 = scalar_lea.sflag [#allocation6], %s123
          %s125 = sand.u32 %s46, 1
          %s126 = smul.addr %s125, 64
          %s127 = scalar_lea.vmem [#allocation5], %s126
          %s128 = smul.u32 4, %s15
          %s130 = ssub.s32 1024, 1024
          %131 = vsyncadd %s124, %s130
          %s132 = smul.addr %s128, 2
          %s133 = smul.addr %s132, 128
          %s134 = scalar_lea.hbm %s1, %s133
          %s135 = sshll.u32 %s127, 4
          %s136 = int_to_ptr.vmem [resolvable:$true] %s135
          %141 = dma.hbm_to_vmem [thread:$0]  %s134, 1024, %s136, %s124, 256, 256, 16
        $region24: #{tpu_custom_call.1} parent=19 // pred_fallthru
          _
      $region20: #{tpu_custom_call.1} parent=5 // pred_fallthru
        _
      %p142 = scmp.le.s32.totalorder 1, %s15
      %p143 = scmp.lt.s32.totalorder %s15, 3
      %p144 = pnand %p142, %p143
      %p145 = pneg %p144
      // Predicated region
      $region25: #{tpu_custom_call.1} parent=5 // pred_check
        _
      $region26: #{tpu_custom_call.1} parent=5 // pred_check_branch
        %147 = sbr.rel (%p144) target = $region28
      $region27: #{tpu_custom_call.1} parent=5 // pred_region
        %s148 = ssub.s32 %s15, 1
        // Predicated region
        $region29: #{tpu_custom_call.1} parent=27 // pred_check
          %p149 = pneg %p36
        $region30: #{tpu_custom_call.1} parent=27 // pred_check_branch
          %151 = sbr.rel (%p149) target = $region32
        $region31: #{tpu_custom_call.1} parent=27 // pred_region
          %152 = dma.done [#allocation3], 32768
        $region32: #{tpu_custom_call.1} parent=27 // pred_fallthru
          _
        %s153 = sand.u32 %s49, 1
        %s154 = scalar_lea.sflag [#allocation6], %s153
        %s155 = sand.u32 %s49, 1
        %s156 = smul.addr %s155, 64
        %s157 = scalar_lea.vmem [#allocation5], %s156
        // Predicated region
        $region33: #{tpu_custom_call.1} parent=27 // pred_check
          %p158 = pneg %p62
        $region34: #{tpu_custom_call.1} parent=27 // pred_check_branch
          %160 = sbr.rel (%p158) target = $region36
        $region35: #{tpu_custom_call.1} parent=27 // pred_region
          %161 = dma.done %s154, 1024
        $region36: #{tpu_custom_call.1} parent=27 // pred_fallthru
          _
        %p162 = pneg %p36
        %p163 = pneg %p33
        %s164 = sand.u32 %s49, 1
        %s165 = scalar_lea.sflag [#allocation6], %s164
        %s166 = sand.u32 %s49, 1
        %s167 = smul.addr %s166, 64
        %s168 = scalar_lea.vmem [#allocation5], %s167
        %p169 = pneg %p62
        %p170 = pneg %p59
        %p171 = pneg %p88
        %p172 = pneg %p85
        %s173 = sand.u32 %s75, 1
        %s174 = scalar_lea.sflag [#allocation4], %s173
        %s175 = sand.u32 %s75, 1
        %s176 = smul.addr %s175, 256
        %s177 = scalar_lea.vmem [#allocation7], %s176
        %s178 = smul.u32 4, %s20
        %s179 = smul.u32 4, %s20
        %v180 = vld [vmem:[%s157] sm:$0xff]
        %v181 = vld [vmem:[%s157 + $0x8] sm:$0xff]
        %v182 = vld [vmem:[%s157 + $0x10] sm:$0xff]
        %v183 = vld [vmem:[%s157 + $0x18] sm:$0xff]
        %v184 = vld [vmem:[%s157 + $0x20] sm:$0xff]
        %v185 = vld [vmem:[%s157 + $0x28] sm:$0xff]
        %v186 = vld [vmem:[%s157 + $0x30] sm:$0xff]
        %v187 = vld [vmem:[%s157 + $0x38] sm:$0xff]
        %v188 = vld [vmem:[#allocation2] sm:$0xff]
        %v189 = vld [vmem:[#allocation2 + $0x8] sm:$0xff]
        %v190 = vld [vmem:[#allocation2 + $0x10] sm:$0xff]
        %v191 = vld [vmem:[#allocation2 + $0x18] sm:$0xff]
        %v192 = vld [vmem:[#allocation2 + $0x20] sm:$0xff]
        %v193 = vld [vmem:[#allocation2 + $0x28] sm:$0xff]
        %v194 = vld [vmem:[#allocation2 + $0x30] sm:$0xff]
        %v195 = vld [vmem:[#allocation2 + $0x38] sm:$0xff]
        %v196 = vld [vmem:[#allocation2 + $0x40] sm:$0xff]
        %v197 = vld [vmem:[#allocation2 + $0x48] sm:$0xff]
        %v198 = vld [vmem:[#allocation2 + $0x50] sm:$0xff]
        %v199 = vld [vmem:[#allocation2 + $0x58] sm:$0xff]
        %v200 = vld [vmem:[#allocation2 + $0x60] sm:$0xff]
        %v201 = vld [vmem:[#allocation2 + $0x68] sm:$0xff]
        %v202 = vld [vmem:[#allocation2 + $0x70] sm:$0xff]
        %v203 = vld [vmem:[#allocation2 + $0x78] sm:$0xff]
        %v204 = vld [vmem:[#allocation2 + $0x80] sm:$0xff]
        %v205 = vld [vmem:[#allocation2 + $0x88] sm:$0xff]
        %v206 = vld [vmem:[#allocation2 + $0x90] sm:$0xff]
        %v207 = vld [vmem:[#allocation2 + $0x98] sm:$0xff]
        %v208 = vld [vmem:[#allocation2 + $0xa0] sm:$0xff]
        %v209 = vld [vmem:[#allocation2 + $0xa8] sm:$0xff]
        %v210 = vld [vmem:[#allocation2 + $0xb0] sm:$0xff]
        %v211 = vld [vmem:[#allocation2 + $0xb8] sm:$0xff]
        %v212 = vld [vmem:[#allocation2 + $0xc0] sm:$0xff]
        %v213 = vld [vmem:[#allocation2 + $0xc8] sm:$0xff]
        %v214 = vld [vmem:[#allocation2 + $0xd0] sm:$0xff]
        %v215 = vld [vmem:[#allocation2 + $0xd8] sm:$0xff]
        %v216 = vld [vmem:[#allocation2 + $0xe0] sm:$0xff]
        %v217 = vld [vmem:[#allocation2 + $0xe8] sm:$0xff]
        %v218 = vld [vmem:[#allocation2 + $0xf0] sm:$0xff]
        %v219 = vld [vmem:[#allocation2 + $0xf8] sm:$0xff]
        %v220 = vld [vmem:[#allocation2 + $0x100] sm:$0xff]
        %v221 = vld [vmem:[#allocation2 + $0x108] sm:$0xff]
        %v222 = vld [vmem:[#allocation2 + $0x110] sm:$0xff]
        %v223 = vld [vmem:[#allocation2 + $0x118] sm:$0xff]
        %v224 = vld [vmem:[#allocation2 + $0x120] sm:$0xff]
        %v225 = vld [vmem:[#allocation2 + $0x128] sm:$0xff]
        %v226 = vld [vmem:[#allocation2 + $0x130] sm:$0xff]
        %v227 = vld [vmem:[#allocation2 + $0x138] sm:$0xff]
        %v228 = vld [vmem:[#allocation2 + $0x140] sm:$0xff]
        %v229 = vld [vmem:[#allocation2 + $0x148] sm:$0xff]
        %v230 = vld [vmem:[#allocation2 + $0x150] sm:$0xff]
        %v231 = vld [vmem:[#allocation2 + $0x158] sm:$0xff]
        %v232 = vld [vmem:[#allocation2 + $0x160] sm:$0xff]
        %v233 = vld [vmem:[#allocation2 + $0x168] sm:$0xff]
        %v234 = vld [vmem:[#allocation2 + $0x170] sm:$0xff]
        %v235 = vld [vmem:[#allocation2 + $0x178] sm:$0xff]
        %v236 = vld [vmem:[#allocation2 + $0x180] sm:$0xff]
        %v237 = vld [vmem:[#allocation2 + $0x188] sm:$0xff]
        %v238 = vld [vmem:[#allocation2 + $0x190] sm:$0xff]
        %v239 = vld [vmem:[#allocation2 + $0x198] sm:$0xff]
        %v240 = vld [vmem:[#allocation2 + $0x1a0] sm:$0xff]
        %v241 = vld [vmem:[#allocation2 + $0x1a8] sm:$0xff]
        %v242 = vld [vmem:[#allocation2 + $0x1b0] sm:$0xff]
        %v243 = vld [vmem:[#allocation2 + $0x1b8] sm:$0xff]
        %v244 = vld [vmem:[#allocation2 + $0x1c0] sm:$0xff]
        %v245 = vld [vmem:[#allocation2 + $0x1c8] sm:$0xff]
        %v246 = vld [vmem:[#allocation2 + $0x1d0] sm:$0xff]
        %v247 = vld [vmem:[#allocation2 + $0x1d8] sm:$0xff]
        %v248 = vld [vmem:[#allocation2 + $0x1e0] sm:$0xff]
        %v249 = vld [vmem:[#allocation2 + $0x1e8] sm:$0xff]
        %v250 = vld [vmem:[#allocation2 + $0x1f0] sm:$0xff]
        %v251 = vld [vmem:[#allocation2 + $0x1f8] sm:$0xff]
        %v252 = vld [vmem:[#allocation2 + $0x200] sm:$0xff]
        %v253 = vld [vmem:[#allocation2 + $0x208] sm:$0xff]
        %v254 = vld [vmem:[#allocation2 + $0x210] sm:$0xff]
        %v255 = vld [vmem:[#allocation2 + $0x218] sm:$0xff]
        %v256 = vld [vmem:[#allocation2 + $0x220] sm:$0xff]
        %v257 = vld [vmem:[#allocation2 + $0x228] sm:$0xff]
        %v258 = vld [vmem:[#allocation2 + $0x230] sm:$0xff]
        %v259 = vld [vmem:[#allocation2 + $0x238] sm:$0xff]
        %v260 = vld [vmem:[#allocation2 + $0x240] sm:$0xff]
        %v261 = vld [vmem:[#allocation2 + $0x248] sm:$0xff]
        %v262 = vld [vmem:[#allocation2 + $0x250] sm:$0xff]
        %v263 = vld [vmem:[#allocation2 + $0x258] sm:$0xff]
        %v264 = vld [vmem:[#allocation2 + $0x260] sm:$0xff]
        %v265 = vld [vmem:[#allocation2 + $0x268] sm:$0xff]
        %v266 = vld [vmem:[#allocation2 + $0x270] sm:$0xff]
        %v267 = vld [vmem:[#allocation2 + $0x278] sm:$0xff]
        %v268 = vld [vmem:[#allocation2 + $0x280] sm:$0xff]
        %v269 = vld [vmem:[#allocation2 + $0x288] sm:$0xff]
        %v270 = vld [vmem:[#allocation2 + $0x290] sm:$0xff]
        %v271 = vld [vmem:[#allocation2 + $0x298] sm:$0xff]
        %v272 = vld [vmem:[#allocation2 + $0x2a0] sm:$0xff]
        %v273 = vld [vmem:[#allocation2 + $0x2a8] sm:$0xff]
        %v274 = vld [vmem:[#allocation2 + $0x2b0] sm:$0xff]
        %v275 = vld [vmem:[#allocation2 + $0x2b8] sm:$0xff]
        %v276 = vld [vmem:[#allocation2 + $0x2c0] sm:$0xff]
        %v277 = vld [vmem:[#allocation2 + $0x2c8] sm:$0xff]
        %v278 = vld [vmem:[#allocation2 + $0x2d0] sm:$0xff]
        %v279 = vld [vmem:[#allocation2 + $0x2d8] sm:$0xff]
        %v280 = vld [vmem:[#allocation2 + $0x2e0] sm:$0xff]
        %v281 = vld [vmem:[#allocation2 + $0x2e8] sm:$0xff]
        %v282 = vld [vmem:[#allocation2 + $0x2f0] sm:$0xff]
        %v283 = vld [vmem:[#allocation2 + $0x2f8] sm:$0xff]
        %v284 = vld [vmem:[#allocation2 + $0x300] sm:$0xff]
        %v285 = vld [vmem:[#allocation2 + $0x308] sm:$0xff]
        %v286 = vld [vmem:[#allocation2 + $0x310] sm:$0xff]
        %v287 = vld [vmem:[#allocation2 + $0x318] sm:$0xff]
        %v288 = vld [vmem:[#allocation2 + $0x320] sm:$0xff]
        %v289 = vld [vmem:[#allocation2 + $0x328] sm:$0xff]
        %v290 = vld [vmem:[#allocation2 + $0x330] sm:$0xff]
        %v291 = vld [vmem:[#allocation2 + $0x338] sm:$0xff]
        %v292 = vld [vmem:[#allocation2 + $0x340] sm:$0xff]
        %v293 = vld [vmem:[#allocation2 + $0x348] sm:$0xff]
        %v294 = vld [vmem:[#allocation2 + $0x350] sm:$0xff]
        %v295 = vld [vmem:[#allocation2 + $0x358] sm:$0xff]
        %v296 = vld [vmem:[#allocation2 + $0x360] sm:$0xff]
        %v297 = vld [vmem:[#allocation2 + $0x368] sm:$0xff]
        %v298 = vld [vmem:[#allocation2 + $0x370] sm:$0xff]
        %v299 = vld [vmem:[#allocation2 + $0x378] sm:$0xff]
        %v300 = vld [vmem:[#allocation2 + $0x380] sm:$0xff]
        %v301 = vld [vmem:[#allocation2 + $0x388] sm:$0xff]
        %v302 = vld [vmem:[#allocation2 + $0x390] sm:$0xff]
        %v303 = vld [vmem:[#allocation2 + $0x398] sm:$0xff]
        %v304 = vld [vmem:[#allocation2 + $0x3a0] sm:$0xff]
        %v305 = vld [vmem:[#allocation2 + $0x3a8] sm:$0xff]
        %v306 = vld [vmem:[#allocation2 + $0x3b0] sm:$0xff]
        %v307 = vld [vmem:[#allocation2 + $0x3b8] sm:$0xff]
        %v308 = vld [vmem:[#allocation2 + $0x3c0] sm:$0xff]
        %v309 = vld [vmem:[#allocation2 + $0x3c8] sm:$0xff]
        %v310 = vld [vmem:[#allocation2 + $0x3d0] sm:$0xff]
        %v311 = vld [vmem:[#allocation2 + $0x3d8] sm:$0xff]
        %v312 = vld [vmem:[#allocation2 + $0x3e0] sm:$0xff]
        %v313 = vld [vmem:[#allocation2 + $0x3e8] sm:$0xff]
        %v314 = vld [vmem:[#allocation2 + $0x3f0] sm:$0xff]
        %v315 = vld [vmem:[#allocation2 + $0x3f8] sm:$0xff]
        %v316 = vld [vmem:[#allocation2 + $0x400] sm:$0xff]
        %v317 = vld [vmem:[#allocation2 + $0x408] sm:$0xff]
        %v318 = vld [vmem:[#allocation2 + $0x410] sm:$0xff]
        %v319 = vld [vmem:[#allocation2 + $0x418] sm:$0xff]
        %v320 = vld [vmem:[#allocation2 + $0x420] sm:$0xff]
        %v321 = vld [vmem:[#allocation2 + $0x428] sm:$0xff]
        %v322 = vld [vmem:[#allocation2 + $0x430] sm:$0xff]
        %v323 = vld [vmem:[#allocation2 + $0x438] sm:$0xff]
        %v324 = vld [vmem:[#allocation2 + $0x440] sm:$0xff]
        %v325 = vld [vmem:[#allocation2 + $0x448] sm:$0xff]
        %v326 = vld [vmem:[#allocation2 + $0x450] sm:$0xff]
        %v327 = vld [vmem:[#allocation2 + $0x458] sm:$0xff]
        %v328 = vld [vmem:[#allocation2 + $0x460] sm:$0xff]
        %v329 = vld [vmem:[#allocation2 + $0x468] sm:$0xff]
        %v330 = vld [vmem:[#allocation2 + $0x470] sm:$0xff]
        %v331 = vld [vmem:[#allocation2 + $0x478] sm:$0xff]
        %v332 = vld [vmem:[#allocation2 + $0x480] sm:$0xff]
        %v333 = vld [vmem:[#allocation2 + $0x488] sm:$0xff]
        %v334 = vld [vmem:[#allocation2 + $0x490] sm:$0xff]
        %v335 = vld [vmem:[#allocation2 + $0x498] sm:$0xff]
        %v336 = vld [vmem:[#allocation2 + $0x4a0] sm:$0xff]
        %v337 = vld [vmem:[#allocation2 + $0x4a8] sm:$0xff]
        %v338 = vld [vmem:[#allocation2 + $0x4b0] sm:$0xff]
        %v339 = vld [vmem:[#allocation2 + $0x4b8] sm:$0xff]
        %v340 = vld [vmem:[#allocation2 + $0x4c0] sm:$0xff]
        %v341 = vld [vmem:[#allocation2 + $0x4c8] sm:$0xff]
        %v342 = vld [vmem:[#allocation2 + $0x4d0] sm:$0xff]
        %v343 = vld [vmem:[#allocation2 + $0x4d8] sm:$0xff]
        %v344 = vld [vmem:[#allocation2 + $0x4e0] sm:$0xff]
        %v345 = vld [vmem:[#allocation2 + $0x4e8] sm:$0xff]
        %v346 = vld [vmem:[#allocation2 + $0x4f0] sm:$0xff]
        %v347 = vld [vmem:[#allocation2 + $0x4f8] sm:$0xff]
        %v348 = vld [vmem:[#allocation2 + $0x500] sm:$0xff]
        %v349 = vld [vmem:[#allocation2 + $0x508] sm:$0xff]
        %v350 = vld [vmem:[#allocation2 + $0x510] sm:$0xff]
        %v351 = vld [vmem:[#allocation2 + $0x518] sm:$0xff]
        %v352 = vld [vmem:[#allocation2 + $0x520] sm:$0xff]
        %v353 = vld [vmem:[#allocation2 + $0x528] sm:$0xff]
        %v354 = vld [vmem:[#allocation2 + $0x530] sm:$0xff]
        %v355 = vld [vmem:[#allocation2 + $0x538] sm:$0xff]
        %v356 = vld [vmem:[#allocation2 + $0x540] sm:$0xff]
        %v357 = vld [vmem:[#allocation2 + $0x548] sm:$0xff]
        %v358 = vld [vmem:[#allocation2 + $0x550] sm:$0xff]
        %v359 = vld [vmem:[#allocation2 + $0x558] sm:$0xff]
        %v360 = vld [vmem:[#allocation2 + $0x560] sm:$0xff]
        %v361 = vld [vmem:[#allocation2 + $0x568] sm:$0xff]
        %v362 = vld [vmem:[#allocation2 + $0x570] sm:$0xff]
        %v363 = vld [vmem:[#allocation2 + $0x578] sm:$0xff]
        %v364 = vld [vmem:[#allocation2 + $0x580] sm:$0xff]
        %v365 = vld [vmem:[#allocation2 + $0x588] sm:$0xff]
        %v366 = vld [vmem:[#allocation2 + $0x590] sm:$0xff]
        %v367 = vld [vmem:[#allocation2 + $0x598] sm:$0xff]
        %v368 = vld [vmem:[#allocation2 + $0x5a0] sm:$0xff]
        %v369 = vld [vmem:[#allocation2 + $0x5a8] sm:$0xff]
        %v370 = vld [vmem:[#allocation2 + $0x5b0] sm:$0xff]
        %v371 = vld [vmem:[#allocation2 + $0x5b8] sm:$0xff]
        %v372 = vld [vmem:[#allocation2 + $0x5c0] sm:$0xff]
        %v373 = vld [vmem:[#allocation2 + $0x5c8] sm:$0xff]
        %v374 = vld [vmem:[#allocation2 + $0x5d0] sm:$0xff]
        %v375 = vld [vmem:[#allocation2 + $0x5d8] sm:$0xff]
        %v376 = vld [vmem:[#allocation2 + $0x5e0] sm:$0xff]
        %v377 = vld [vmem:[#allocation2 + $0x5e8] sm:$0xff]
        %v378 = vld [vmem:[#allocation2 + $0x5f0] sm:$0xff]
        %v379 = vld [vmem:[#allocation2 + $0x5f8] sm:$0xff]
        %v380 = vld [vmem:[#allocation2 + $0x600] sm:$0xff]
        %v381 = vld [vmem:[#allocation2 + $0x608] sm:$0xff]
        %v382 = vld [vmem:[#allocation2 + $0x610] sm:$0xff]
        %v383 = vld [vmem:[#allocation2 + $0x618] sm:$0xff]
        %v384 = vld [vmem:[#allocation2 + $0x620] sm:$0xff]
        %v385 = vld [vmem:[#allocation2 + $0x628] sm:$0xff]
        %v386 = vld [vmem:[#allocation2 + $0x630] sm:$0xff]
        %v387 = vld [vmem:[#allocation2 + $0x638] sm:$0xff]
        %v388 = vld [vmem:[#allocation2 + $0x640] sm:$0xff]
        %v389 = vld [vmem:[#allocation2 + $0x648] sm:$0xff]
        %v390 = vld [vmem:[#allocation2 + $0x650] sm:$0xff]
        %v391 = vld [vmem:[#allocation2 + $0x658] sm:$0xff]
        %v392 = vld [vmem:[#allocation2 + $0x660] sm:$0xff]
        %v393 = vld [vmem:[#allocation2 + $0x668] sm:$0xff]
        %v394 = vld [vmem:[#allocation2 + $0x670] sm:$0xff]
        %v395 = vld [vmem:[#allocation2 + $0x678] sm:$0xff]
        %v396 = vld [vmem:[#allocation2 + $0x680] sm:$0xff]
        %v397 = vld [vmem:[#allocation2 + $0x688] sm:$0xff]
        %v398 = vld [vmem:[#allocation2 + $0x690] sm:$0xff]
        %v399 = vld [vmem:[#allocation2 + $0x698] sm:$0xff]
        %v400 = vld [vmem:[#allocation2 + $0x6a0] sm:$0xff]
        %v401 = vld [vmem:[#allocation2 + $0x6a8] sm:$0xff]
        %v402 = vld [vmem:[#allocation2 + $0x6b0] sm:$0xff]
        %v403 = vld [vmem:[#allocation2 + $0x6b8] sm:$0xff]
        %v404 = vld [vmem:[#allocation2 + $0x6c0] sm:$0xff]
        %v405 = vld [vmem:[#allocation2 + $0x6c8] sm:$0xff]
        %v406 = vld [vmem:[#allocation2 + $0x6d0] sm:$0xff]
        %v407 = vld [vmem:[#allocation2 + $0x6d8] sm:$0xff]
        %v408 = vld [vmem:[#allocation2 + $0x6e0] sm:$0xff]
        %v409 = vld [vmem:[#allocation2 + $0x6e8] sm:$0xff]
        %v410 = vld [vmem:[#allocation2 + $0x6f0] sm:$0xff]
        %v411 = vld [vmem:[#allocation2 + $0x6f8] sm:$0xff]
        %v412 = vld [vmem:[#allocation2 + $0x700] sm:$0xff]
        %v413 = vld [vmem:[#allocation2 + $0x708] sm:$0xff]
        %v414 = vld [vmem:[#allocation2 + $0x710] sm:$0xff]
        %v415 = vld [vmem:[#allocation2 + $0x718] sm:$0xff]
        %v416 = vld [vmem:[#allocation2 + $0x720] sm:$0xff]
        %v417 = vld [vmem:[#allocation2 + $0x728] sm:$0xff]
        %v418 = vld [vmem:[#allocation2 + $0x730] sm:$0xff]
        %v419 = vld [vmem:[#allocation2 + $0x738] sm:$0xff]
        %v420 = vld [vmem:[#allocation2 + $0x740] sm:$0xff]
        %v421 = vld [vmem:[#allocation2 + $0x748] sm:$0xff]
        %v422 = vld [vmem:[#allocation2 + $0x750] sm:$0xff]
        %v423 = vld [vmem:[#allocation2 + $0x758] sm:$0xff]
        %v424 = vld [vmem:[#allocation2 + $0x760] sm:$0xff]
        %v425 = vld [vmem:[#allocation2 + $0x768] sm:$0xff]
        %v426 = vld [vmem:[#allocation2 + $0x770] sm:$0xff]
        %v427 = vld [vmem:[#allocation2 + $0x778] sm:$0xff]
        %v428 = vld [vmem:[#allocation2 + $0x780] sm:$0xff]
        %v429 = vld [vmem:[#allocation2 + $0x788] sm:$0xff]
        %v430 = vld [vmem:[#allocation2 + $0x790] sm:$0xff]
        %v431 = vld [vmem:[#allocation2 + $0x798] sm:$0xff]
        %v432 = vld [vmem:[#allocation2 + $0x7a0] sm:$0xff]
        %v433 = vld [vmem:[#allocation2 + $0x7a8] sm:$0xff]
        %v434 = vld [vmem:[#allocation2 + $0x7b0] sm:$0xff]
        %v435 = vld [vmem:[#allocation2 + $0x7b8] sm:$0xff]
        %v436 = vld [vmem:[#allocation2 + $0x7c0] sm:$0xff]
        %v437 = vld [vmem:[#allocation2 + $0x7c8] sm:$0xff]
        %v438 = vld [vmem:[#allocation2 + $0x7d0] sm:$0xff]
        %v439 = vld [vmem:[#allocation2 + $0x7d8] sm:$0xff]
        %v440 = vld [vmem:[#allocation2 + $0x7e0] sm:$0xff]
        %v441 = vld [vmem:[#allocation2 + $0x7e8] sm:$0xff]
        %v442 = vld [vmem:[#allocation2 + $0x7f0] sm:$0xff]
        %v443 = vld [vmem:[#allocation2 + $0x7f8] sm:$0xff]
        %444 = vmatprep.subr.mxu0 %v189
        %445 = vmatpush1.msra.mxu0 %v188
        %446 = vmatprep.subr.mxu0 %v197
        %447 = vmatpush1.msra.mxu0 %v196
        %448 = vmatprep.subr.mxu0 %v205
        %449 = vmatpush1.msra.mxu0 %v204
        %450 = vmatprep.subr.mxu0 %v213
        %451 = vmatpush1.msra.mxu0 %v212
        %452 = vmatprep.subr.mxu0 %v221
        %453 = vmatpush1.msra.mxu0 %v220
        %454 = vmatprep.subr.mxu0 %v229
        %455 = vmatpush1.msra.mxu0 %v228
        %456 = vmatprep.subr.mxu0 %v237
        %457 = vmatpush1.msra.mxu0 %v236
        %458 = vmatprep.subr.mxu0 %v245
        %459 = vmatpush1.msra.mxu0 %v244
        %460 = vmatprep.subr.mxu0 %v253
        %461 = vmatpush1.msra.mxu0 %v252
        %462 = vmatprep.subr.mxu0 %v261
        %463 = vmatpush1.msra.mxu0 %v260
        %464 = vmatprep.subr.mxu0 %v269
        %465 = vmatpush1.msra.mxu0 %v268
        %466 = vmatprep.subr.mxu0 %v277
        %467 = vmatpush1.msra.mxu0 %v276
        %468 = vmatprep.subr.mxu0 %v285
        %469 = vmatpush1.msra.mxu0 %v284
        %470 = vmatprep.subr.mxu0 %v293
        %471 = vmatpush1.msra.mxu0 %v292
        %472 = vmatprep.subr.mxu0 %v301
        %473 = vmatpush1.msra.mxu0 %v300
        %474 = vmatprep.subr.mxu0 %v309
        %475 = vmatpush1.msra.mxu0 %v308
        %476 = vmatprep.subr.mxu0 %v317
        %477 = vmatpush1.msra.mxu0 %v316
        %478 = vmatprep.subr.mxu0 %v325
        %479 = vmatpush1.msra.mxu0 %v324
        %480 = vmatprep.subr.mxu0 %v333
        %481 = vmatpush1.msra.mxu0 %v332
        %482 = vmatprep.subr.mxu0 %v341
        %483 = vmatpush1.msra.mxu0 %v340
        %484 = vmatprep.subr.mxu0 %v349
        %485 = vmatpush1.msra.mxu0 %v348
        %486 = vmatprep.subr.mxu0 %v357
        %487 = vmatpush1.msra.mxu0 %v356
        %488 = vmatprep.subr.mxu0 %v365
        %489 = vmatpush1.msra.mxu0 %v364
        %490 = vmatprep.subr.mxu0 %v373
        %491 = vmatpush1.msra.mxu0 %v372
        %492 = vmatprep.subr.mxu0 %v381
        %493 = vmatpush1.msra.mxu0 %v380
        %494 = vmatprep.subr.mxu0 %v389
        %495 = vmatpush1.msra.mxu0 %v388
        %496 = vmatprep.subr.mxu0 %v397
        %497 = vmatpush1.msra.mxu0 %v396
        %498 = vmatprep.subr.mxu0 %v405
        %499 = vmatpush1.msra.mxu0 %v404
        %500 = vmatprep.subr.mxu0 %v413
        %501 = vmatpush1.msra.mxu0 %v412
        %502 = vmatprep.subr.mxu0 %v421
        %503 = vmatpush1.msra.mxu0 %v420
        %504 = vmatprep.subr.mxu0 %v429
        %505 = vmatpush1.msra.mxu0 %v428
        %506 = vmatprep.subr.mxu0 %v437
        %507 = vmatpush1.msra.mxu0 %v436
        %508 = vmatprep.mubr.f32.mxu0 %v181
        %509 = vmatmul.mubr.f32.gmra.mrb[0].mxu0 %v180
        %v510 = vpop.f32.mrb[0].mxu0
        %v511 = vadd.f32 0.0, %v510
        %v512 = vpop.f32.mrb[0].mxu0
        %v513 = vadd.f32 0.0, %v512
        %514 = vmatprep.mubr.f32.mxu0 %v183
        %515 = vmatmul.mubr.f32.gmra.mrb[0].mxu0 %v182
        %v516 = vpop.f32.mrb[0].mxu0
        %v517 = vadd.f32 0.0, %v516
        %v518 = vpop.f32.mrb[0].mxu0
        %v519 = vadd.f32 0.0, %v518
        %520 = vmatprep.mubr.f32.mxu0 %v185
        %521 = vmatmul.mubr.f32.gmra.mrb[0].mxu0 %v184
        %v522 = vpop.f32.mrb[0].mxu0
        %v523 = vadd.f32 0.0, %v522
        %v524 = vpop.f32.mrb[0].mxu0
        %v525 = vadd.f32 0.0, %v524
        %526 = vmatprep.mubr.f32.mxu0 %v187
        %527 = vmatmul.mubr.f32.gmra.mrb[0].mxu0 %v186
        %v528 = vpop.f32.mrb[0].mxu0
        %v529 = vadd.f32 0.0, %v528
        %v530 = vpop.f32.mrb[0].mxu0
        %v531 = vadd.f32 0.0, %v530
        %532 = vdwg.mxu0
        %533 = vmatprep.subr.mxu0 %v191
        %534 = vmatpush1.msra.mxu0 %v190
        %535 = vmatprep.subr.mxu0 %v199
        %536 = vmatpush1.msra.mxu0 %v198
        %537 = vmatprep.subr.mxu0 %v207
        %538 = vmatpush1.msra.mxu0 %v206
        %539 = vmatprep.subr.mxu0 %v215
        %540 = vmatpush1.msra.mxu0 %v214
        %541 = vmatprep.subr.mxu0 %v223
        %542 = vmatpush1.msra.mxu0 %v222
        %543 = vmatprep.subr.mxu0 %v231
        %544 = vmatpush1.msra.mxu0 %v230
        %545 = vmatprep.subr.mxu0 %v239
        %546 = vmatpush1.msra.mxu0 %v238
        %547 = vmatprep.subr.mxu0 %v247
        %548 = vmatpush1.msra.mxu0 %v246
        %549 = vmatprep.subr.mxu0 %v255
        %550 = vmatpush1.msra.mxu0 %v254
        %551 = vmatprep.subr.mxu0 %v263
        %552 = vmatpush1.msra.mxu0 %v262
        %553 = vmatprep.subr.mxu0 %v271
        %554 = vmatpush1.msra.mxu0 %v270
        %555 = vmatprep.subr.mxu0 %v279
        %556 = vmatpush1.msra.mxu0 %v278
        %557 = vmatprep.subr.mxu0 %v287
        %558 = vmatpush1.msra.mxu0 %v286
        %559 = vmatprep.subr.mxu0 %v295
        %560 = vmatpush1.msra.mxu0 %v294
        %561 = vmatprep.subr.mxu0 %v303
        %562 = vmatpush1.msra.mxu0 %v302
        %563 = vmatprep.subr.mxu0 %v311
        %564 = vmatpush1.msra.mxu0 %v310
        %565 = vmatprep.subr.mxu0 %v319
        %566 = vmatpush1.msra.mxu0 %v318
        %567 = vmatprep.subr.mxu0 %v327
        %568 = vmatpush1.msra.mxu0 %v326
        %569 = vmatprep.subr.mxu0 %v335
        %570 = vmatpush1.msra.mxu0 %v334
        %571 = vmatprep.subr.mxu0 %v343
        %572 = vmatpush1.msra.mxu0 %v342
        %573 = vmatprep.subr.mxu0 %v351
        %574 = vmatpush1.msra.mxu0 %v350
        %575 = vmatprep.subr.mxu0 %v359
        %576 = vmatpush1.msra.mxu0 %v358
        %577 = vmatprep.subr.mxu0 %v367
        %578 = vmatpush1.msra.mxu0 %v366
        %579 = vmatprep.subr.mxu0 %v375
        %580 = vmatpush1.msra.mxu0 %v374
        %581 = vmatprep.subr.mxu0 %v383
        %582 = vmatpush1.msra.mxu0 %v382
        %583 = vmatprep.subr.mxu0 %v391
        %584 = vmatpush1.msra.mxu0 %v390
        %585 = vmatprep.subr.mxu0 %v399
        %586 = vmatpush1.msra.mxu0 %v398
        %587 = vmatprep.subr.mxu0 %v407
        %588 = vmatpush1.msra.mxu0 %v406
        %589 = vmatprep.subr.mxu0 %v415
        %590 = vmatpush1.msra.mxu0 %v414
        %591 = vmatprep.subr.mxu0 %v423
        %592 = vmatpush1.msra.mxu0 %v422
        %593 = vmatprep.subr.mxu0 %v431
        %594 = vmatpush1.msra.mxu0 %v430
        %595 = vmatprep.subr.mxu0 %v439
        %596 = vmatpush1.msra.mxu0 %v438
        %597 = vmatprep.mubr.f32.mxu0 %v181
        %598 = vmatmul.mubr.f32.gmra.mrb[0].mxu0 %v180
        %v599 = vpop.f32.mrb[0].mxu0
        %v600 = vadd.f32 0.0, %v599
        %v601 = vpop.f32.mrb[0].mxu0
        %v602 = vadd.f32 0.0, %v601
        %603 = vmatprep.mubr.f32.mxu0 %v183
        %604 = vmatmul.mubr.f32.gmra.mrb[0].mxu0 %v182
        %v605 = vpop.f32.mrb[0].mxu0
        %v606 = vadd.f32 0.0, %v605
        %v607 = vpop.f32.mrb[0].mxu0
        %v608 = vadd.f32 0.0, %v607
        %609 = vmatprep.mubr.f32.mxu0 %v185
        %610 = vmatmul.mubr.f32.gmra.mrb[0].mxu0 %v184
        %v611 = vpop.f32.mrb[0].mxu0
        %v612 = vadd.f32 0.0, %v611
        %v613 = vpop.f32.mrb[0].mxu0
        %v614 = vadd.f32 0.0, %v613
        %615 = vmatprep.mubr.f32.mxu0 %v187
        %616 = vmatmul.mubr.f32.gmra.mrb[0].mxu0 %v186
        %v617 = vpop.f32.mrb[0].mxu0
        %v618 = vadd.f32 0.0, %v617
        %v619 = vpop.f32.mrb[0].mxu0
        %v620 = vadd.f32 0.0, %v619
        %621 = vdwg.mxu0
        %622 = vmatprep.subr.mxu0 %v193
        %623 = vmatpush1.msra.mxu0 %v192
        %624 = vmatprep.subr.mxu0 %v201
        %625 = vmatpush1.msra.mxu0 %v200
        %626 = vmatprep.subr.mxu0 %v209
        %627 = vmatpush1.msra.mxu0 %v208
        %628 = vmatprep.subr.mxu0 %v217
        %629 = vmatpush1.msra.mxu0 %v216
        %630 = vmatprep.subr.mxu0 %v225
        %631 = vmatpush1.msra.mxu0 %v224
        %632 = vmatprep.subr.mxu0 %v233
        %633 = vmatpush1.msra.mxu0 %v232
        %634 = vmatprep.subr.mxu0 %v241
        %635 = vmatpush1.msra.mxu0 %v240
        %636 = vmatprep.subr.mxu0 %v249
        %637 = vmatpush1.msra.mxu0 %v248
        %638 = vmatprep.subr.mxu0 %v257
        %639 = vmatpush1.msra.mxu0 %v256
        %640 = vmatprep.subr.mxu0 %v265
        %641 = vmatpush1.msra.mxu0 %v264
        %642 = vmatprep.subr.mxu0 %v273
        %643 = vmatpush1.msra.mxu0 %v272
        %644 = vmatprep.subr.mxu0 %v281
        %645 = vmatpush1.msra.mxu0 %v280
        %646 = vmatprep.subr.mxu0 %v289
        %647 = vmatpush1.msra.mxu0 %v288
        %648 = vmatprep.subr.mxu0 %v297
        %649 = vmatpush1.msra.mxu0 %v296
        %650 = vmatprep.subr.mxu0 %v305
        %651 = vmatpush1.msra.mxu0 %v304
        %652 = vmatprep.subr.mxu0 %v313
        %653 = vmatpush1.msra.mxu0 %v312
        %654 = vmatprep.subr.mxu0 %v321
        %655 = vmatpush1.msra.mxu0 %v320
        %656 = vmatprep.subr.mxu0 %v329
        %657 = vmatpush1.msra.mxu0 %v328
        %658 = vmatprep.subr.mxu0 %v337
        %659 = vmatpush1.msra.mxu0 %v336
        %660 = vmatprep.subr.mxu0 %v345
        %661 = vmatpush1.msra.mxu0 %v344
        %662 = vmatprep.subr.mxu0 %v353
        %663 = vmatpush1.msra.mxu0 %v352
        %664 = vmatprep.subr.mxu0 %v361
        %665 = vmatpush1.msra.mxu0 %v360
        %666 = vmatprep.subr.mxu0 %v369
        %667 = vmatpush1.msra.mxu0 %v368
        %668 = vmatprep.subr.mxu0 %v377
        %669 = vmatpush1.msra.mxu0 %v376
        %670 = vmatprep.subr.mxu0 %v385
        %671 = vmatpush1.msra.mxu0 %v384
        %672 = vmatprep.subr.mxu0 %v393
        %673 = vmatpush1.msra.mxu0 %v392
        %674 = vmatprep.subr.mxu0 %v401
        %675 = vmatpush1.msra.mxu0 %v400
        %676 = vmatprep.subr.mxu0 %v409
        %677 = vmatpush1.msra.mxu0 %v408
        %678 = vmatprep.subr.mxu0 %v417
        %679 = vmatpush1.msra.mxu0 %v416
        %680 = vmatprep.subr.mxu0 %v425
        %681 = vmatpush1.msra.mxu0 %v424
        %682 = vmatprep.subr.mxu0 %v433
        %683 = vmatpush1.msra.mxu0 %v432
        %684 = vmatprep.subr.mxu0 %v441
        %685 = vmatpush1.msra.mxu0 %v440
        %686 = vmatprep.mubr.f32.mxu0 %v181
        %687 = vmatmul.mubr.f32.gmra.mrb[0].mxu0 %v180
        %v688 = vpop.f32.mrb[0].mxu0
        %v689 = vadd.f32 0.0, %v688
        %v690 = vpop.f32.mrb[0].mxu0
        %v691 = vadd.f32 0.0, %v690
        %692 = vmatprep.mubr.f32.mxu0 %v183
        %693 = vmatmul.mubr.f32.gmra.mrb[0].mxu0 %v182
        %v694 = vpop.f32.mrb[0].mxu0
        %v695 = vadd.f32 0.0, %v694
        %v696 = vpop.f32.mrb[0].mxu0
        %v697 = vadd.f32 0.0, %v696
        %698 = vmatprep.mubr.f32.mxu0 %v185
        %699 = vmatmul.mubr.f32.gmra.mrb[0].mxu0 %v184
        %v700 = vpop.f32.mrb[0].mxu0
        %v701 = vadd.f32 0.0, %v700
        %v702 = vpop.f32.mrb[0].mxu0
        %v703 = vadd.f32 0.0, %v702
        %704 = vmatprep.mubr.f32.mxu0 %v187
        %705 = vmatmul.mubr.f32.gmra.mrb[0].mxu0 %v186
        %v706 = vpop.f32.mrb[0].mxu0
        %v707 = vadd.f32 0.0, %v706
        %v708 = vpop.f32.mrb[0].mxu0
        %v709 = vadd.f32 0.0, %v708
        %710 = vdwg.mxu0
        %711 = vmatprep.subr.mxu0 %v195
        %712 = vmatpush1.msra.mxu0 %v194
        %713 = vmatprep.subr.mxu0 %v203
        %714 = vmatpush1.msra.mxu0 %v202
        %715 = vmatprep.subr.mxu0 %v211
        %716 = vmatpush1.msra.mxu0 %v210
        %717 = vmatprep.subr.mxu0 %v219
        %718 = vmatpush1.msra.mxu0 %v218
        %719 = vmatprep.subr.mxu0 %v227
        %720 = vmatpush1.msra.mxu0 %v226
        %721 = vmatprep.subr.mxu0 %v235
        %722 = vmatpush1.msra.mxu0 %v234
        %723 = vmatprep.subr.mxu0 %v243
        %724 = vmatpush1.msra.mxu0 %v242
        %725 = vmatprep.subr.mxu0 %v251
        %726 = vmatpush1.msra.mxu0 %v250
        %727 = vmatprep.subr.mxu0 %v259
        %728 = vmatpush1.msra.mxu0 %v258
        %729 = vmatprep.subr.mxu0 %v267
        %730 = vmatpush1.msra.mxu0 %v266
        %731 = vmatprep.subr.mxu0 %v275
        %732 = vmatpush1.msra.mxu0 %v274
        %733 = vmatprep.subr.mxu0 %v283
        %734 = vmatpush1.msra.mxu0 %v282
        %735 = vmatprep.subr.mxu0 %v291
        %736 = vmatpush1.msra.mxu0 %v290
        %737 = vmatprep.subr.mxu0 %v299
        %738 = vmatpush1.msra.mxu0 %v298
        %739 = vmatprep.subr.mxu0 %v307
        %740 = vmatpush1.msra.mxu0 %v306
        %741 = vmatprep.subr.mxu0 %v315
        %742 = vmatpush1.msra.mxu0 %v314
        %743 = vmatprep.subr.mxu0 %v323
        %744 = vmatpush1.msra.mxu0 %v322
        %745 = vmatprep.subr.mxu0 %v331
        %746 = vmatpush1.msra.mxu0 %v330
        %747 = vmatprep.subr.mxu0 %v339
        %748 = vmatpush1.msra.mxu0 %v338
        %749 = vmatprep.subr.mxu0 %v347
        %750 = vmatpush1.msra.mxu0 %v346
        %751 = vmatprep.subr.mxu0 %v355
        %752 = vmatpush1.msra.mxu0 %v354
        %753 = vmatprep.subr.mxu0 %v363
        %754 = vmatpush1.msra.mxu0 %v362
        %755 = vmatprep.subr.mxu0 %v371
        %756 = vmatpush1.msra.mxu0 %v370
        %757 = vmatprep.subr.mxu0 %v379
        %758 = vmatpush1.msra.mxu0 %v378
        %759 = vmatprep.subr.mxu0 %v387
        %760 = vmatpush1.msra.mxu0 %v386
        %761 = vmatprep.subr.mxu0 %v395
        %762 = vmatpush1.msra.mxu0 %v394
        %763 = vmatprep.subr.mxu0 %v403
        %764 = vmatpush1.msra.mxu0 %v402
        %765 = vmatprep.subr.mxu0 %v411
        %766 = vmatpush1.msra.mxu0 %v410
        %767 = vmatprep.subr.mxu0 %v419
        %768 = vmatpush1.msra.mxu0 %v418
        %769 = vmatprep.subr.mxu0 %v427
        %770 = vmatpush1.msra.mxu0 %v426
        %771 = vmatprep.subr.mxu0 %v435
        %772 = vmatpush1.msra.mxu0 %v434
        %773 = vmatprep.subr.mxu0 %v443
        %774 = vmatpush1.msra.mxu0 %v442
        %775 = vmatprep.mubr.f32.mxu0 %v181
        %776 = vmatmul.mubr.f32.gmra.mrb[0].mxu0 %v180
        %v777 = vpop.f32.mrb[0].mxu0
        %v778 = vadd.f32 0.0, %v777
        %v779 = vpop.f32.mrb[0].mxu0
        %v780 = vadd.f32 0.0, %v779
        %781 = vmatprep.mubr.f32.mxu0 %v183
        %782 = vmatmul.mubr.f32.gmra.mrb[0].mxu0 %v182
        %v783 = vpop.f32.mrb[0].mxu0
        %v784 = vadd.f32 0.0, %v783
        %v785 = vpop.f32.mrb[0].mxu0
        %v786 = vadd.f32 0.0, %v785
        %787 = vmatprep.mubr.f32.mxu0 %v185
        %788 = vmatmul.mubr.f32.gmra.mrb[0].mxu0 %v184
        %v789 = vpop.f32.mrb[0].mxu0
        %v790 = vadd.f32 0.0, %v789
        %v791 = vpop.f32.mrb[0].mxu0
        %v792 = vadd.f32 0.0, %v791
        %793 = vmatprep.mubr.f32.mxu0 %v187
        %794 = vmatmul.mubr.f32.gmra.mrb[0].mxu0 %v186
        %v795 = vpop.f32.mrb[0].mxu0
        %v796 = vadd.f32 0.0, %v795
        %v797 = vpop.f32.mrb[0].mxu0
        %v798 = vadd.f32 0.0, %v797
        %799 = vdwg.mxu0
        %800 = vst [vmem:[%s177] sm:$0xff] %v511
        %801 = vst [vmem:[%s177 + $0x8] sm:$0xff] %v513
        %802 = vst [vmem:[%s177 + $0x10] sm:$0xff] %v600
        %803 = vst [vmem:[%s177 + $0x18] sm:$0xff] %v602
        %804 = vst [vmem:[%s177 + $0x20] sm:$0xff] %v689
        %805 = vst [vmem:[%s177 + $0x28] sm:$0xff] %v691
        %806 = vst [vmem:[%s177 + $0x30] sm:$0xff] %v778
        %807 = vst [vmem:[%s177 + $0x38] sm:$0xff] %v780
        %808 = vst [vmem:[%s177 + $0x40] sm:$0xff] %v517
        %809 = vst [vmem:[%s177 + $0x48] sm:$0xff] %v519
        %810 = vst [vmem:[%s177 + $0x50] sm:$0xff] %v606
        %811 = vst [vmem:[%s177 + $0x58] sm:$0xff] %v608
        %812 = vst [vmem:[%s177 + $0x60] sm:$0xff] %v695
        %813 = vst [vmem:[%s177 + $0x68] sm:$0xff] %v697
        %814 = vst [vmem:[%s177 + $0x70] sm:$0xff] %v784
        %815 = vst [vmem:[%s177 + $0x78] sm:$0xff] %v786
        %816 = vst [vmem:[%s177 + $0x80] sm:$0xff] %v523
        %817 = vst [vmem:[%s177 + $0x88] sm:$0xff] %v525
        %818 = vst [vmem:[%s177 + $0x90] sm:$0xff] %v612
        %819 = vst [vmem:[%s177 + $0x98] sm:$0xff] %v614
        %820 = vst [vmem:[%s177 + $0xa0] sm:$0xff] %v701
        %821 = vst [vmem:[%s177 + $0xa8] sm:$0xff] %v703
        %822 = vst [vmem:[%s177 + $0xb0] sm:$0xff] %v790
        %823 = vst [vmem:[%s177 + $0xb8] sm:$0xff] %v792
        %824 = vst [vmem:[%s177 + $0xc0] sm:$0xff] %v529
        %825 = vst [vmem:[%s177 + $0xc8] sm:$0xff] %v531
        %826 = vst [vmem:[%s177 + $0xd0] sm:$0xff] %v618
        %827 = vst [vmem:[%s177 + $0xd8] sm:$0xff] %v620
        %828 = vst [vmem:[%s177 + $0xe0] sm:$0xff] %v707
        %829 = vst [vmem:[%s177 + $0xe8] sm:$0xff] %v709
        %830 = vst [vmem:[%s177 + $0xf0] sm:$0xff] %v796
        %831 = vst [vmem:[%s177 + $0xf8] sm:$0xff] %v798
        %s832 = sand.u32 %s75, 1
        %s833 = scalar_lea.sflag [#allocation4], %s832
        %s834 = sand.u32 %s75, 1
        %s835 = smul.addr %s834, 256
        %s836 = scalar_lea.vmem [#allocation7], %s835
        // Predicated region
        $region37: #{tpu_custom_call.1} parent=27 // pred_check
          %p837 = pneg %p85
        $region38: #{tpu_custom_call.1} parent=27 // pred_check_branch
          %839 = sbr.rel (%p837) target = $region40
        $region39: #{tpu_custom_call.1} parent=27 // pred_region
          %s840 = smul.u32 4, %s20
          %s842 = ssub.s32 4096, 4096
          %843 = vsyncadd %s833, %s842
          %s844 = smul.addr %s840, 8
          %s845 = smul.addr %s844, 128
          %s846 = scalar_lea.hbm %s2, %s845
          %s847 = sshll.u32 %s836, 4
          %s848 = int_to_ptr.vmem [resolvable:$true] %s847
          %853 = dma.vmem_to_hbm [thread:$0]  %s848, 4096, %s846, %s833, 1024, 1024, 64
        $region40: #{tpu_custom_call.1} parent=27 // pred_fallthru
          _
      $region28: #{tpu_custom_call.1} parent=5 // pred_fallthru
        _
      %p854 = scmp.le.s32.totalorder 2, %s15
      // Predicated region
      $region41: #{tpu_custom_call.1} parent=5 // pred_check
        %p855 = pneg %p854
      $region42: #{tpu_custom_call.1} parent=5 // pred_check_branch
        %857 = sbr.rel (%p855) target = $region44
      $region43: #{tpu_custom_call.1} parent=5 // pred_region
        %s858 = ssub.s32 %s15, 2
        // Predicated region
        $region45: #{tpu_custom_call.1} parent=43 // pred_check
          %p859 = pneg %p91
        $region46: #{tpu_custom_call.1} parent=43 // pred_check_branch
          %861 = sbr.rel (%p859) target = $region48
        $region47: #{tpu_custom_call.1} parent=43 // pred_region
          %s862 = sand.u32 %s76, 1
          %s863 = scalar_lea.sflag [#allocation4], %s862
          %s864 = sand.u32 %s76, 1
          %s865 = smul.addr %s864, 256
          %s866 = scalar_lea.vmem [#allocation7], %s865
          %867 = dma.done %s863, 4096
        $region48: #{tpu_custom_call.1} parent=43 // pred_fallthru
          _
      $region44: #{tpu_custom_call.1} parent=5 // pred_fallthru
        _
    $region6: #{tpu_custom_call.1} parent=1 // loop_footer
      %s19 = sadd.s32 1, %s15
    $region7: #{tpu_custom_call.1} parent=1 // loop_footer_branch
      %14 = sbr.rel target = $region3
    $region8: #{tpu_custom_call.1} parent=1 // loop_exit
      _
    %868 = vsyncpa [#allocation3], 1
    %s869 = scalar_lea.sflag [#allocation3], 1
    %870 = vsyncpa %s869, 1
    %871 = vsyncpa [#allocation6], 1
    %s872 = scalar_lea.sflag [#allocation6], 1
    %873 = vsyncpa %s872, 1
    %874 = vsyncpa [#allocation4], 1
    %s875 = scalar_lea.sflag [#allocation4], 1
    %876 = vsyncpa %s875, 1

</llo_original>
